<compile_context>
chip_gen: v5e
topology: v5e:2x2
jax: 0.10.0
libtpu: 0.0.40
codegen_flags: <defaults>
</compile_context>

<pallas_src>
import functools

import jax
import jax.numpy as jnp
from jax.experimental import pallas as pl
from jax.experimental.pallas import tpu as pltpu


def _round_up(x, m):
    return ((x + m - 1) // m) * m


def invnet_kernel(z0_ref, z1_ref, w1a_ref, w1b_ref, b1_ref, w2_ref, b2_ref,
                  out_ref, *, n_actions):
    # Split-weight form of tanh(cat(z0, z1) @ W1 + b1): two bf16 MXU pushes
    # accumulate into the same f32 result, no cross-lane concat needed.
    z0 = z0_ref[...].astype(jnp.bfloat16)
    z1 = z1_ref[...].astype(jnp.bfloat16)
    h = jnp.dot(z0, w1a_ref[...], preferred_element_type=jnp.float32)
    h = h + jnp.dot(z1, w1b_ref[...], preferred_element_type=jnp.float32)
    h = jnp.tanh(h + b1_ref[...])                                    # f32 tanh (EUP)
    logits = jnp.dot(h.astype(jnp.bfloat16), w2_ref[...],
                     preferred_element_type=jnp.float32) + b2_ref[...]
    # Store only the real action columns: small masked vst instead of a padded
    # 128-lane HBM writeback (output block last dim == full array extent).
    out_ref[...] = logits[:, :n_actions].astype(out_ref.dtype)


def prepare_params(w1, b1, w2, b2, n_latent_dims, *, lane=128):
    """One-time parameter prep: split W1, pad feature dims, cast MXU operands to bf16.

    w1: [2*D, H]; b1: [1, H] or [H]; w2: [H, A]; b2: [1, A] or [A]  (all f32, [in, out] layout)
    Padded columns/rows are zero, so padded hidden units contribute nothing and
    padded logit columns are sliced away inside the kernel before the store.
    """
    D = n_latent_dims
    H = w1.shape[1]
    A = w2.shape[1]
    Hp = _round_up(H, lane)
    Ap = _round_up(A, lane)
    b1 = jnp.asarray(b1, jnp.float32).reshape(1, H)
    b2 = jnp.asarray(b2, jnp.float32).reshape(1, A)
    w1a = jnp.pad(w1[:D], ((0, 0), (0, Hp - H))).astype(jnp.bfloat16)    # [D, Hp]
    w1b = jnp.pad(w1[D:], ((0, 0), (0, Hp - H))).astype(jnp.bfloat16)    # [D, Hp]
    b1p = jnp.pad(b1, ((0, 0), (0, Hp - H)))                             # [1, Hp] f32
    w2p = jnp.pad(w2, ((0, Hp - H), (0, Ap - A))).astype(jnp.bfloat16)   # [Hp, Ap]
    b2p = jnp.pad(b2, ((0, 0), (0, Ap - A)))                             # [1, Ap] f32
    return w1a, w1b, b1p, w2p, b2p


def _choose_batch_tile(B, batch_tile):
    """Pick a block size along batch: multiple of 8 (or the full batch)."""
    tb = max(8, (int(batch_tile) // 8) * 8)          # force 8-alignment (robustness)
    if B <= tb:
        if B >= 16:
            # keep >= 2 grid steps so v7x megacore can shard the batch axis
            return _round_up(pl.cdiv(B, 2), 8)
        return B                                     # full-extent block, single step
    return tb


def invnet_forward(z0, z1, w1a, w1b, b1, w2, b2, n_actions, *,
                   batch_tile=4096, out_dtype=jnp.float32):
    """z0, z1: [B, D] f32; prepared params from prepare_params; returns [B, n_actions]."""
    B, D = z0.shape
    Hp = w1a.shape[1]
    Ap = w2.shape[1]
    A = n_actions

    TB = _choose_batch_tile(B, batch_tile)
    grid_b = pl.cdiv(B, TB)                          # partial last tile is masked

    kernel = functools.partial(invnet_kernel, n_actions=A)
    return pl.pallas_call(
        kernel,
        out_shape=jax.ShapeDtypeStruct((B, A), out_dtype),
        grid=(grid_b,),
        in_specs=[
            pl.BlockSpec((TB, D), lambda i: (i, 0)),     # z0 tile
            pl.BlockSpec((TB, D), lambda i: (i, 0)),     # z1 tile
            pl.BlockSpec((D, Hp), lambda i: (0, 0)),     # W1a (block-invariant)
            pl.BlockSpec((D, Hp), lambda i: (0, 0)),     # W1b
            pl.BlockSpec((1, Hp), lambda i: (0, 0)),     # b1
            pl.BlockSpec((Hp, Ap), lambda i: (0, 0)),    # W2
            pl.BlockSpec((1, Ap), lambda i: (0, 0)),     # b2
        ],
        out_specs=pl.BlockSpec((TB, A), lambda i: (i, 0)),  # unpadded logits store
        compiler_params=pltpu.CompilerParams(
            dimension_semantics=("parallel",),           # batch axis fully independent
            vmem_limit_bytes=32 * 1024 * 1024,           # headroom for big TB (fits v5e/v6e/v7x)
        ),
    )(z0, z1, w1a, w1b, b1, w2, b2)


def invnet_reference(z0, z1, w1, b1, w2, b2):
    """Pure-JAX reference with the same bf16 MXU operands / f32 accumulate."""
    ctx = jnp.concatenate([z0, z1], axis=-1)
    h = jnp.tanh(
        jnp.dot(ctx.astype(jnp.bfloat16), w1.astype(jnp.bfloat16),
                preferred_element_type=jnp.float32) + b1)
    return jnp.dot(h.astype(jnp.bfloat16), w2.astype(jnp.bfloat16),
                   preferred_element_type=jnp.float32) + b2


def init_params(key, n_latent_dims, n_units_per_layer, n_actions):
    """Deterministic synthetic params (PyTorch Linear-like uniform init), stored [in, out]."""
    k1, k2, k3, k4 = jax.random.split(key, 4)
    in1 = 2 * n_latent_dims
    lim1 = 1.0 / jnp.sqrt(in1)
    lim2 = 1.0 / jnp.sqrt(n_units_per_layer)
    w1 = jax.random.uniform(k1, (in1, n_units_per_layer), jnp.float32, -lim1, lim1)
    b1 = jax.random.uniform(k2, (1, n_units_per_layer), jnp.float32, -lim1, lim1)
    w2 = jax.random.uniform(k3, (n_units_per_layer, n_actions), jnp.float32, -lim2, lim2)
    b2 = jax.random.uniform(k4, (1, n_actions), jnp.float32, -lim2, lim2)
    return w1, b1, w2, b2


if __name__ == "__main__":
    # InvNet defaults: n_latent_dims=4, n_hidden_layers=1, n_units_per_layer=32.
    n_latent_dims = 4
    n_units_per_layer = 32
    n_actions = 6
    batch = 8

    key = jax.random.PRNGKey(0)
    kz0, kz1, kp = jax.random.split(key, 3)
    z0 = jax.random.normal(kz0, (batch, n_latent_dims), jnp.float32)
    z1 = jax.random.normal(kz1, (batch, n_latent_dims), jnp.float32)
    w1, b1, w2, b2 = init_params(kp, n_latent_dims, n_units_per_layer, n_actions)

    # One-time parameter prep (hoisted out of the forward call).
    params = prepare_params(w1, b1, w2, b2, n_latent_dims)

    # Small default-shape run (single full-extent tile).
    out = invnet_forward(z0, z1, *params, n_actions)
    jax.block_until_ready(out)
    ref = invnet_reference(z0, z1, w1, b1, w2, b2)
    assert out.shape == (batch, n_actions)
    assert jnp.allclose(out, ref, atol=1e-2, rtol=1e-2), float(jnp.max(jnp.abs(out - ref)))

    # Multi-step grid + partial (masked) last tile path, no pad/slice passes.
    batch2 = 40
    kz2, kz3 = jax.random.split(jax.random.PRNGKey(1), 2)
    z0b = jax.random.normal(kz2, (batch2, n_latent_dims), jnp.float32)
    z1b = jax.random.normal(kz3, (batch2, n_latent_dims), jnp.float32)
    out2 = invnet_forward(z0b, z1b, *params, n_actions)
    jax.block_until_ready(out2)
    ref2 = invnet_reference(z0b, z1b, w1, b1, w2, b2)
    assert out2.shape == (batch2, n_actions)
    assert jnp.allclose(out2, ref2, atol=1e-2, rtol=1e-2), float(jnp.max(jnp.abs(out2 - ref2)))

    print("KERNEL_OK")
</pallas_src>

<mosaic_0001>
module attributes {stable_mosaic.version = 11 : i64} {
  func.func @invnet_kernel(%arg0: i32, %arg1: memref<8x4xf32, #tpu.memory_space<vmem>>, %arg2: memref<8x4xf32, #tpu.memory_space<vmem>>, %arg3: memref<4x128xbf16, #tpu.memory_space<vmem>>, %arg4: memref<4x128xbf16, #tpu.memory_space<vmem>>, %arg5: memref<1x128xf32, #tpu.memory_space<vmem>>, %arg6: memref<128x128xbf16, #tpu.memory_space<vmem>>, %arg7: memref<1x128xf32, #tpu.memory_space<vmem>>, %arg8: memref<8x6xf32, #tpu.memory_space<vmem>>) attributes {dimension_semantics = [#tpu.dimension_semantics<parallel>], iteration_bounds = array<i64: 1>, scalar_prefetch = 0 : i64, scratch_operands = 0 : i64, tpu.core_type = #tpu.core_type<tc>, window_params = [{transform_indices = @transform_0, window_bounds = array<i64: 8, 4>}, {transform_indices = @transform_1, window_bounds = array<i64: 8, 4>}, {pipeline_mode = #tpu.pipeline_mode<synchronous>, transform_indices = @transform_2, window_bounds = array<i64: 4, 128>}, {pipeline_mode = #tpu.pipeline_mode<synchronous>, transform_indices = @transform_3, window_bounds = array<i64: 4, 128>}, {pipeline_mode = #tpu.pipeline_mode<synchronous>, transform_indices = @transform_4, window_bounds = array<i64: 1, 128>}, {pipeline_mode = #tpu.pipeline_mode<synchronous>, transform_indices = @transform_5, window_bounds = array<i64: 128, 128>}, {pipeline_mode = #tpu.pipeline_mode<synchronous>, transform_indices = @transform_6, window_bounds = array<i64: 1, 128>}, {transform_indices = @transform_7, window_bounds = array<i64: 8, 6>}]} {
    %c0 = arith.constant 0 : index
    %c0_0 = arith.constant 0 : index
    %0 = vector.load %arg1[%c0, %c0_0] : memref<8x4xf32, #tpu.memory_space<vmem>>, vector<8x4xf32>
    %1 = arith.truncf %0 : vector<8x4xf32> to vector<8x4xbf16>
    %c0_1 = arith.constant 0 : index
    %c0_2 = arith.constant 0 : index
    %2 = vector.load %arg2[%c0_1, %c0_2] : memref<8x4xf32, #tpu.memory_space<vmem>>, vector<8x4xf32>
    %3 = arith.truncf %2 : vector<8x4xf32> to vector<8x4xbf16>
    %c0_3 = arith.constant 0 : index
    %c0_4 = arith.constant 0 : index
    %4 = vector.load %arg3[%c0_3, %c0_4] : memref<4x128xbf16, #tpu.memory_space<vmem>>, vector<4x128xbf16>
    %cst = arith.constant dense<0.000000e+00> : vector<8x128xf32>
    %5 = tpu.matmul %1, %4, %cst {dimension_numbers = #tpu.dot_dimension_numbers<[1], [0], [0], [1], [0, 0, 1, 1], [], []>} : vector<8x4xbf16>, vector<4x128xbf16>, vector<8x128xf32> -> vector<8x128xf32>
    %c0_5 = arith.constant 0 : index
    %c0_6 = arith.constant 0 : index
    %6 = vector.load %arg4[%c0_5, %c0_6] : memref<4x128xbf16, #tpu.memory_space<vmem>>, vector<4x128xbf16>
    %cst_7 = arith.constant dense<0.000000e+00> : vector<8x128xf32>
    %7 = tpu.matmul %3, %6, %cst_7 {dimension_numbers = #tpu.dot_dimension_numbers<[1], [0], [0], [1], [0, 0, 1, 1], [], []>} : vector<8x4xbf16>, vector<4x128xbf16>, vector<8x128xf32> -> vector<8x128xf32>
    %8 = arith.addf %5, %7 : vector<8x128xf32>
    %c0_8 = arith.constant 0 : index
    %c0_9 = arith.constant 0 : index
    %9 = vector.load %arg5[%c0_8, %c0_9] : memref<1x128xf32, #tpu.memory_space<vmem>>, vector<1x128xf32>
    %10 = vector.broadcast %9 : vector<1x128xf32> to vector<8x128xf32>
    %11 = arith.addf %8, %10 : vector<8x128xf32>
    %12 = math.tanh %11 : vector<8x128xf32>
    %13 = arith.truncf %12 : vector<8x128xf32> to vector<8x128xbf16>
    %c0_10 = arith.constant 0 : index
    %c0_11 = arith.constant 0 : index
    %14 = vector.load %arg6[%c0_10, %c0_11] : memref<128x128xbf16, #tpu.memory_space<vmem>>, vector<128x128xbf16>
    %cst_12 = arith.constant dense<0.000000e+00> : vector<8x128xf32>
    %15 = tpu.matmul %13, %14, %cst_12 {dimension_numbers = #tpu.dot_dimension_numbers<[1], [0], [0], [1], [0, 0, 1, 1], [], []>} : vector<8x128xbf16>, vector<128x128xbf16>, vector<8x128xf32> -> vector<8x128xf32>
    %c0_13 = arith.constant 0 : index
    %c0_14 = arith.constant 0 : index
    %16 = vector.load %arg7[%c0_13, %c0_14] : memref<1x128xf32, #tpu.memory_space<vmem>>, vector<1x128xf32>
    %17 = vector.broadcast %16 : vector<1x128xf32> to vector<8x128xf32>
    %18 = arith.addf %15, %17 : vector<8x128xf32>
    %19 = vector.extract_strided_slice %18 {offsets = [0, 0], sizes = [8, 6], strides = [1, 1]} : vector<8x128xf32> to vector<8x6xf32>
    %c0_15 = arith.constant 0 : index
    %c0_16 = arith.constant 0 : index
    %20 = vector.load %arg8[%c0_15, %c0_16] : memref<8x6xf32, #tpu.memory_space<vmem>>, vector<8x6xf32>
    tpu.vector_store %arg8[%c0_15, %c0_16], %19 {strides = array<i32>} : memref<8x6xf32, #tpu.memory_space<vmem>>, vector<8x6xf32>,
    return
  }
  func.func @transform_0(%arg0: i32) -> (i32, i32) {
    %c0_i32 = arith.constant 0 : i32
    %c0_i32_0 = arith.constant 0 : i32
    return %arg0, %c0_i32 : i32, i32
  }
  func.func @transform_1(%arg0: i32) -> (i32, i32) {
    %c0_i32 = arith.constant 0 : i32
    %c0_i32_0 = arith.constant 0 : i32
    return %arg0, %c0_i32 : i32, i32
  }
  func.func @transform_2(%arg0: i32) -> (i32, i32) {
    %c0_i32 = arith.constant 0 : i32
    %c0_i32_0 = arith.constant 0 : i32
    %c0_i32_1 = arith.constant 0 : i32
    return %c0_i32, %c0_i32_0 : i32, i32
  }
  func.func @transform_3(%arg0: i32) -> (i32, i32) {
    %c0_i32 = arith.constant 0 : i32
    %c0_i32_0 = arith.constant 0 : i32
    %c0_i32_1 = arith.constant 0 : i32
    return %c0_i32, %c0_i32_0 : i32, i32
  }
  func.func @transform_4(%arg0: i32) -> (i32, i32) {
    %c0_i32 = arith.constant 0 : i32
    %c0_i32_0 = arith.constant 0 : i32
    %c0_i32_1 = arith.constant 0 : i32
    return %c0_i32, %c0_i32_0 : i32, i32
  }
  func.func @transform_5(%arg0: i32) -> (i32, i32) {
    %c0_i32 = arith.constant 0 : i32
    %c0_i32_0 = arith.constant 0 : i32
    %c0_i32_1 = arith.constant 0 : i32
    return %c0_i32, %c0_i32_0 : i32, i32
  }
  func.func @transform_6(%arg0: i32) -> (i32, i32) {
    %c0_i32 = arith.constant 0 : i32
    %c0_i32_0 = arith.constant 0 : i32
    %c0_i32_1 = arith.constant 0 : i32
    return %c0_i32, %c0_i32_0 : i32, i32
  }
  func.func @transform_7(%arg0: i32) -> (i32, i32) {
    %c0_i32 = arith.constant 0 : i32
    %c0_i32_0 = arith.constant 0 : i32
    return %arg0, %c0_i32 : i32, i32
  }
}

</mosaic_0001>

<llo_original>
// kernel: tpu_custom_call.1
$region0: #{tpu_custom_call.1}
  #allocation0 [shape = 'u32[]', space=smem, size = 0x4, offset = 0x4, fixed_abs, tag = 'smem constant byte address 0x4 - core index']
  #allocation1 [shape = 'u32[72,128]{1,0:T(1,128)}', space=vmem, size = 0x9000, scoped, tag = 'internal scratch']
  %s0 = inlined_call_operand.vmem [shape: f32[8,4], index: 0, kind: input, shape index: {}]
  %s1 = inlined_call_operand.vmem [shape: f32[8,4], index: 1, kind: input, shape index: {}]
  %s2 = inlined_call_operand.vmem [shape: bf16[4,128], index: 2, kind: input, shape index: {}]
  %s3 = inlined_call_operand.vmem [shape: bf16[4,128], index: 3, kind: input, shape index: {}]
  %s4 = inlined_call_operand.vmem [shape: f32[1,128], index: 4, kind: input, shape index: {}]
  %s5 = inlined_call_operand.hbm [shape: bf16[128,128], index: 5, kind: input, shape index: {}]
  %s6 = inlined_call_operand.vmem [shape: f32[1,128], index: 6, kind: input, shape index: {}]
  %s7 = inlined_call_operand.hbm [shape: f32[8,6], index: 7, kind: output, shape index: {}]
  %s8 = sld [smem:[#allocation0]]
  $region42: #{tpu_custom_call.1} parent=0
    _
  %s10 = ssub.s32 1, %s8
  %s11 = scalar_select 0, %s10, %s8
  $region1: #{tpu_custom_call.1} parent=0
    #allocation2 [shape = 'u8[32768]{0}', space=vmem, size = 0x8000, scoped, tag = 'input window, operand 5, single buffered']
    #allocation3 [shape = 's32[1]{0}', space=sflag, size = 0x4, scoped, tag = 'scoped memory for tpu_custom_call.1']
    #allocation4 [shape = 's32[1]{0}', space=sflag, size = 0x4, scoped, tag = 'scoped memory for tpu_custom_call.1']
    #allocation5 [shape = 'u8[4096]{0}', space=vmem, size = 0x1000, scoped, tag = 'output window, operand 0, single buffered']
    %12 = vsyncpa [#allocation3], 0
    %13 = vsyncpa [#allocation4], 0
    // Predicated region
    $region2: #{tpu_custom_call.1} parent=1 // pred_check
      _
    $region3: #{tpu_custom_call.1} parent=1 // pred_check_branch
      %15 = sbr.rel (0) target = $region5
    $region4: #{tpu_custom_call.1} parent=1 // pred_region
      _
    $region5: #{tpu_custom_call.1} parent=1 // pred_fallthru
      _
    // Predicated region
    $region6: #{tpu_custom_call.1} parent=1 // pred_check
      _
    $region7: #{tpu_custom_call.1} parent=1 // pred_check_branch
      %17 = sbr.rel (0) target = $region9
    $region8: #{tpu_custom_call.1} parent=1 // pred_region
      _
    $region9: #{tpu_custom_call.1} parent=1 // pred_fallthru
      _
    // Predicated region
    $region10: #{tpu_custom_call.1} parent=1 // pred_check
      _
    $region11: #{tpu_custom_call.1} parent=1 // pred_check_branch
      %19 = sbr.rel (0) target = $region13
    $region12: #{tpu_custom_call.1} parent=1 // pred_region
      _
    $region13: #{tpu_custom_call.1} parent=1 // pred_fallthru
      _
    // Predicated region
    $region14: #{tpu_custom_call.1} parent=1 // pred_check
      _
    $region15: #{tpu_custom_call.1} parent=1 // pred_check_branch
      %21 = sbr.rel (0) target = $region17
    $region16: #{tpu_custom_call.1} parent=1 // pred_region
      _
    $region17: #{tpu_custom_call.1} parent=1 // pred_fallthru
      _
    // Predicated region
    $region18: #{tpu_custom_call.1} parent=1 // pred_check
      _
    $region19: #{tpu_custom_call.1} parent=1 // pred_check_branch
      %23 = sbr.rel (0) target = $region21
    $region20: #{tpu_custom_call.1} parent=1 // pred_region
      _
    $region21: #{tpu_custom_call.1} parent=1 // pred_fallthru
      _
    // Predicated region
    $region22: #{tpu_custom_call.1} parent=1 // pred_check
      _
    $region23: #{tpu_custom_call.1} parent=1 // pred_check_branch
      %25 = sbr.rel (0) target = $region25
    $region24: #{tpu_custom_call.1} parent=1 // pred_region
      %27 = vsyncadd [#allocation3], 0
      %s28 = sshll.u32 %s5, 4
      %s29 = int_to_ptr.hbm [resolvable:$true] %s28
      %s30 = sshll.u32 [#allocation2], 4
      %s31 = int_to_ptr.vmem [resolvable:$true] %s30
      %36 = dma.hbm_to_vmem [thread:$0]  %s29, 1024, %s31, [#allocation3], 64, 64, 4
    $region25: #{tpu_custom_call.1} parent=1 // pred_fallthru
      _
    // Predicated region
    $region26: #{tpu_custom_call.1} parent=1 // pred_check
      _
    $region27: #{tpu_custom_call.1} parent=1 // pred_check_branch
      %38 = sbr.rel (0) target = $region29
    $region28: #{tpu_custom_call.1} parent=1 // pred_region
      _
    $region29: #{tpu_custom_call.1} parent=1 // pred_fallthru
      _
    // Predicated region
    $region30: #{tpu_custom_call.1} parent=1 // pred_check
      _
    $region31: #{tpu_custom_call.1} parent=1 // pred_check_branch
      %40 = sbr.rel (0) target = $region33
    $region32: #{tpu_custom_call.1} parent=1 // pred_region
      %42 = dma.done [#allocation3], 1024
    $region33: #{tpu_custom_call.1} parent=1 // pred_fallthru
      _
    %v44 = vld [vmem:[%s0] sm:$0xff]
    %v45 = vpack.c.bf16 %v44, %v44
    %v46 = vld [vmem:[%s1] sm:$0xff]
    %v47 = vpack.c.bf16 %v46, %v46
    %v48 = vld [vmem:[%s2] sm:$0x3]
    %v49 = vld [vmem:[%s3] sm:$0x3]
    %vm50 = vcmask 31744
    %v52 = vsel %vm50, %v47, 0
    %vm54 = vcmask 1041408
    %v56 = vsel %vm54, %v49, 0
    %58 = vmatpush.bf16.msra.mxu0 0
    %59 = vmatpush.bf16.msra.mxu0 0
    %60 = vmatpush.bf16.msra.mxu0 0
    %61 = vmatpush.bf16.msra.mxu0 0
    %62 = vmatpush.bf16.msra.mxu0 0
    %63 = vmatpush.bf16.msra.mxu0 0
    %64 = vmatpush.bf16.msra.mxu0 0
    %65 = vmatpush.bf16.msra.mxu0 %v56
    %66 = vmatmul.bf16.gmra.mxu0 %v52
    %v67 = vpop.f32.mrf.mxu0
    %v68 = vadd.f32 0.0, %v67
    %v69 = vpop.f32.mrf.mxu0
    %70 = vdwg.mxu0
    %v72 = vsel %vm50, %v45, 0
    %v75 = vsel %vm54, %v48, 0
    %77 = vmatpush.bf16.msra.mxu0 0
    %78 = vmatpush.bf16.msra.mxu0 0
    %79 = vmatpush.bf16.msra.mxu0 0
    %80 = vmatpush.bf16.msra.mxu0 0
    %81 = vmatpush.bf16.msra.mxu0 0
    %82 = vmatpush.bf16.msra.mxu0 0
    %83 = vmatpush.bf16.msra.mxu0 0
    %84 = vmatpush.bf16.msra.mxu0 %v75
    %85 = vmatmul.bf16.gmra.mxu0 %v72
    %v86 = vpop.f32.mrf.mxu0
    %v87 = vadd.f32 %v68, %v86
    %v88 = vpop.f32.mrf.mxu0
    %89 = vdwg.mxu0
    %v90 = vld [vmem:[%s4] sm:$0x1]
    %v92 = vperm.slane %v90, 0
    %v94 = vadd.f32 %v87, %v92
    %v95 = vtanh.pop %v94
    %v96 = vpack.c.bf16 %v95, %v95
    %v97 = vld [vmem:[#allocation2] sm:$0xf]
    %v98 = vld [vmem:[#allocation2 + $0x4] sm:$0xf]
    %v99 = vld [vmem:[#allocation2 + $0x8] sm:$0xf]
    %v100 = vld [vmem:[#allocation2 + $0xc] sm:$0xf]
    %v101 = vld [vmem:[#allocation2 + $0x10] sm:$0xf]
    %v102 = vld [vmem:[#allocation2 + $0x14] sm:$0xf]
    %v103 = vld [vmem:[#allocation2 + $0x18] sm:$0xf]
    %v104 = vld [vmem:[#allocation2 + $0x1c] sm:$0xf]
    %v105 = vld [vmem:[#allocation2 + $0x20] sm:$0xf]
    %v106 = vld [vmem:[#allocation2 + $0x24] sm:$0xf]
    %v107 = vld [vmem:[#allocation2 + $0x28] sm:$0xf]
    %v108 = vld [vmem:[#allocation2 + $0x2c] sm:$0xf]
    %v109 = vld [vmem:[#allocation2 + $0x30] sm:$0xf]
    %v110 = vld [vmem:[#allocation2 + $0x34] sm:$0xf]
    %v111 = vld [vmem:[#allocation2 + $0x38] sm:$0xf]
    %v112 = vld [vmem:[#allocation2 + $0x3c] sm:$0xf]
    %v113 = vld [vmem:[%s6] sm:$0x1]
    %v115 = vperm.slane %v113, 0
    %v133 = vunpack.c.l.b16 %v97
    %v134 = vunpack.c.l.b16 %v98
    %v135 = vunpack.c.l.b16 %v99
    %v136 = vunpack.c.l.b16 %v100
    %v137 = vunpack.c.l.b16 %v101
    %v138 = vunpack.c.l.b16 %v102
    %v139 = vunpack.c.l.b16 %v103
    %v140 = vunpack.c.l.b16 %v104
    %v141 = vunpack.c.l.b16 %v105
    %v142 = vunpack.c.l.b16 %v106
    %v143 = vunpack.c.l.b16 %v107
    %v144 = vunpack.c.l.b16 %v108
    %v145 = vunpack.c.l.b16 %v109
    %v146 = vunpack.c.l.b16 %v110
    %v147 = vunpack.c.l.b16 %v111
    %v148 = vunpack.c.l.b16 %v112
    %v149 = vpack.c.b16 %v134, %v133
    %v150 = vpack.c.b16 %v136, %v135
    %v151 = vpack.c.b16 %v138, %v137
    %v152 = vpack.c.b16 %v140, %v139
    %v153 = vpack.c.b16 %v142, %v141
    %v154 = vpack.c.b16 %v144, %v143
    %v155 = vpack.c.b16 %v146, %v145
    %v156 = vpack.c.b16 %v148, %v147
    %165 = vmatpush.bf16.msra.mxu0 %v156
    %166 = vmatpush.bf16.msra.mxu0 %v155
    %167 = vmatpush.bf16.msra.mxu0 %v154
    %168 = vmatpush.bf16.msra.mxu0 %v153
    %169 = vmatpush.bf16.msra.mxu0 %v152
    %170 = vmatpush.bf16.msra.mxu0 %v151
    %171 = vmatpush.bf16.msra.mxu0 %v150
    %172 = vmatpush.bf16.msra.mxu0 %v149
    %173 = vmatmul.bf16.gmra.mxu0 %v96
    %v174 = vpop.f32.mrf.mxu0
    %v175 = vadd.f32 %v115, %v174
    %v176 = vpop.f32.mrf.mxu0
    %177 = vdwg.mxu0
    %vm178 = vcmask 48128
    %179 = vst.msk [vmem:[#allocation5] sm:$0xff] %vm178, %v175
    // Predicated region
    $region34: #{tpu_custom_call.1} parent=1 // pred_check
      _
    $region35: #{tpu_custom_call.1} parent=1 // pred_check_branch
      %181 = sbr.rel (0) target = $region37
    $region36: #{tpu_custom_call.1} parent=1 // pred_region
      %183 = vsyncadd [#allocation4], 0
      %s185 = sshll.u32 [#allocation5], 4
      %s186 = int_to_ptr.vmem [resolvable:$true] %s185
      %s187 = sshll.u32 %s7, 4
      %s188 = int_to_ptr.hbm [resolvable:$true] %s187
      %190 = dma.vmem_to_hbm [thread:$0]  %s186, 128, %s188, [#allocation4]
    $region37: #{tpu_custom_call.1} parent=1 // pred_fallthru
      _
    // Predicated region
    $region38: #{tpu_custom_call.1} parent=1 // pred_check
      _
    $region39: #{tpu_custom_call.1} parent=1 // pred_check_branch
      %192 = sbr.rel (0) target = $region41
    $region40: #{tpu_custom_call.1} parent=1 // pred_region
      %194 = dma.done [#allocation4], 128
    $region41: #{tpu_custom_call.1} parent=1 // pred_fallthru
      _
    %195 = vsyncpa [#allocation3], 1
    %196 = vsyncpa [#allocation4], 1

</llo_original>
